<compile_context>
chip_gen: v7x
topology: tpu7x:2x2x1
jax: 0.10.0
libtpu: 0.0.40
codegen_flags: <defaults>
</compile_context>

<pallas_src>
import jax
import jax.numpy as jnp
from jax.experimental import pallas as pl
from jax.experimental.pallas import tpu as pltpu


def _round_up(x: int, m: int) -> int:
    return (x + m - 1) // m * m


# ---------------------------------------------------------------------------
# Kernel bodies
# ---------------------------------------------------------------------------

def _fullk_kernel(x_ref, w_ref, b_ref, o_ref):
    # One full-K strip per output tile: 2-D grid, no accumulator control flow.
    x = x_ref[...].astype(jnp.bfloat16)            # VPU cast hides under MXU
    acc = jnp.dot(x, w_ref[...], preferred_element_type=jnp.float32)
    o_ref[...] = (acc + b_ref[...]).astype(o_ref.dtype)


def _splitk_f32out_kernel(x_ref, w_ref, b_ref, o_ref):
    # K split across grid axis 2; the f32 output tile doubles as accumulator.
    k = pl.program_id(2)

    @pl.when(k == 0)
    def _():
        o_ref[...] = jnp.zeros_like(o_ref)

    x = x_ref[...].astype(jnp.bfloat16)
    o_ref[...] += jnp.dot(x, w_ref[...], preferred_element_type=jnp.float32)

    @pl.when(k == pl.num_programs(2) - 1)
    def _():
        o_ref[...] += b_ref[...]


def _splitk_acc_kernel(x_ref, w_ref, b_ref, o_ref, acc_ref):
    # K split, non-f32 output: resident f32 VMEM accumulator scratch.
    k = pl.program_id(2)

    @pl.when(k == 0)
    def _():
        acc_ref[...] = jnp.zeros_like(acc_ref)

    x = x_ref[...].astype(jnp.bfloat16)
    acc_ref[...] += jnp.dot(x, w_ref[...], preferred_element_type=jnp.float32)

    @pl.when(k == pl.num_programs(2) - 1)
    def _():
        o_ref[...] = (acc_ref[...] + b_ref[...]).astype(o_ref.dtype)


# ---------------------------------------------------------------------------
# Tile selection / VMEM budgeting
# ---------------------------------------------------------------------------

_TM_PREF = 512     # output-tile rows
_TN_PREF = 1024    # output-tile lanes (multiple of 256 -> full 2x256 MXU width)
_TK_MAX = 2048     # max K chunk when splitting


def _vmem_caps():
    try:
        cap = int(pltpu.get_tpu_info().vmem_capacity_bytes)
    except Exception:
        cap = 64 * 1024 * 1024          # conservative: v7x has the smallest VMEM
    budget = min(int(cap * 0.6), 72 * 1024 * 1024)   # tile-sizing budget
    limit = min(int(cap * 0.8), 96 * 1024 * 1024)    # scoped-VMEM compile limit
    return budget, limit


def _select_tiles(m, k_pad, n_pad, x_itemsize, out_itemsize, vmem_budget):
    """Pick (tm, tn, tk, split_k). k_pad/n_pad are 128-aligned; the chosen
    tn/tk always divide them exactly."""
    tm = min(_TM_PREF, _round_up(m, 16))   # 16-row floor keeps bf16 packing clean

    tn = min(_TN_PREF, n_pad)
    while n_pad % tn:                      # n_pad is 128-aligned -> terminates at 128
        tn -= 128

    def need(tm_, tn_, tk_, split):
        v = (2 * tm_ * tk_ * x_itemsize        # double-buffered x tiles
             + 2 * tk_ * tn_ * 2               # double-buffered bf16 W tiles
             + 2 * tn_ * 4                     # bias tiles
             + 2 * tm_ * tn_ * out_itemsize)   # double-buffered output tiles
        if split and out_itemsize != 4:
            v += tm_ * tn_ * 4                 # f32 accumulator scratch
        return v

    # --- try a full-K strip first (2-D grid, no accumulator control flow) ---
    ftm, ftn = tm, tn
    ok = True
    while need(ftm, ftn, k_pad, split=False) > vmem_budget:
        if ftn >= 256 and (ftn // 2) % 128 == 0 and n_pad % (ftn // 2) == 0:
            ftn //= 2
        elif ftm >= 64:
            ftm //= 2
        else:
            ok = False
            break
    # Keep full-K only if the output tile did not shrink by more than ~4x.
    if ok and ftm * ftn * 4 >= tm * tn:
        return ftm, ftn, k_pad, False

    # --- split K -------------------------------------------------------------
    tk = min(_TK_MAX, k_pad)
    while k_pad % tk:                      # k_pad is 128-aligned -> terminates at 128
        tk -= 128
    while need(tm, tn, tk, split=True) > vmem_budget:
        if tk > 128 and k_pad % (tk // 2) == 0:
            tk //= 2
        elif tn >= 256 and (tn // 2) % 128 == 0 and n_pad % (tn // 2) == 0:
            tn //= 2
        elif tm >= 32:
            tm //= 2
        else:
            break
    return tm, tn, tk, True


# ---------------------------------------------------------------------------
# Forward wrapper
# ---------------------------------------------------------------------------

def _hook_linear_forward(x, w_p, b_p, n_out, *, vmem_budget_override=None):
    """x: (..., k_in); w_p: (k_pad, n_pad) bf16 pre-padded; b_p: (1, n_pad) f32."""
    *lead, k_in = x.shape
    m = 1
    for d in lead:
        m *= int(d)
    k_pad, n_pad = w_p.shape
    out_dtype = x.dtype
    x_itemsize = jnp.dtype(x.dtype).itemsize
    out_itemsize = jnp.dtype(out_dtype).itemsize

    vmem_budget, vmem_limit = _vmem_caps()
    if vmem_budget_override is not None:
        vmem_budget = vmem_budget_override   # tuning/testing hook only

    tm, tn, tk, split_k = _select_tiles(
        m, k_pad, n_pad, x_itemsize, out_itemsize, vmem_budget)
    m_pad = _round_up(m, tm)

    # v7x megacore nudge: guarantee >= 2 "parallel" grid steps when the
    # problem collapses to a single (i, j) tile (small-batch / decode).
    if (m_pad // tm) * (n_pad // tn) == 1 and tn >= 256 and (tn // 2) % 128 == 0:
        tn //= 2

    grid_m = m_pad // tm
    grid_n = n_pad // tn
    grid_k = k_pad // tk

    x2 = x.reshape(m, k_in)
    if m_pad != m or k_pad != k_in:
        # Zero padding along K is mathematically inert; M padding is sliced off.
        # (Common transformer hidden sizes are already 128-aligned -> no pad.)
        x2 = jnp.pad(x2, ((0, m_pad - m), (0, k_pad - k_in)))

    cost = pl.CostEstimate(
        flops=int(2 * m_pad * n_pad * k_pad),
        transcendentals=0,
        bytes_accessed=int(
            m_pad * k_pad * x_itemsize * grid_n     # x streamed once per N tile
            + k_pad * n_pad * 2 * grid_m            # W streamed once per M tile
            + n_pad * 4 * grid_m                    # bias
            + m_pad * n_pad * out_itemsize          # output written once
        ),
    )

    if not split_k:
        out = pl.pallas_call(
            _fullk_kernel,
            out_shape=jax.ShapeDtypeStruct((m_pad, n_pad), out_dtype),
            grid_spec=pltpu.PrefetchScalarGridSpec(
                num_scalar_prefetch=0,
                grid=(grid_m, grid_n),
                in_specs=[
                    pl.BlockSpec((tm, k_pad), lambda i, j: (i, 0)),
                    pl.BlockSpec((k_pad, tn), lambda i, j: (0, j)),
                    pl.BlockSpec((1, tn), lambda i, j: (0, j)),
                ],
                out_specs=pl.BlockSpec((tm, tn), lambda i, j: (i, j)),
            ),
            compiler_params=pltpu.CompilerParams(
                dimension_semantics=("parallel", "parallel"),
                vmem_limit_bytes=vmem_limit,
            ),
            cost_estimate=cost,
        )(x2, w_p, b_p)
    else:
        f32_out = jnp.dtype(out_dtype) == jnp.dtype(jnp.float32)
        kernel = _splitk_f32out_kernel if f32_out else _splitk_acc_kernel
        scratch = [] if f32_out else [pltpu.VMEM((tm, tn), jnp.float32)]
        out = pl.pallas_call(
            kernel,
            out_shape=jax.ShapeDtypeStruct((m_pad, n_pad), out_dtype),
            grid_spec=pltpu.PrefetchScalarGridSpec(
                num_scalar_prefetch=0,
                grid=(grid_m, grid_n, grid_k),
                in_specs=[
                    pl.BlockSpec((tm, tk), lambda i, j, k: (i, k)),
                    pl.BlockSpec((tk, tn), lambda i, j, k: (k, j)),
                    pl.BlockSpec((1, tn), lambda i, j, k: (0, j)),
                ],
                out_specs=pl.BlockSpec((tm, tn), lambda i, j, k: (i, j)),
                scratch_shapes=scratch,
            ),
            compiler_params=pltpu.CompilerParams(
                dimension_semantics=("parallel", "parallel", "arbitrary"),
                vmem_limit_bytes=vmem_limit,
            ),
            cost_estimate=cost,
        )(x2, w_p, b_p)

    return out[:m, :n_out].reshape(*lead, n_out)


class CustomHookLinear:
    """JAX/Pallas analogue of CustomHook(Linear(h_in, h_out), hook_fn = +adv).

    The additive hook perturbation is folded into the bias (one O(H) op at
    construction), so a single fused matmul kernel serves both the enabled
    and disabled states of the hook.
    """

    def __init__(self, w, b, adv):
        k_in, n_out = w.shape
        self.k_in = int(k_in)
        self.n_out = int(n_out)
        self.k_pad = _round_up(self.k_in, 128)
        self.n_pad = _round_up(self.n_out, 128)

        # Pre-cast / pre-pad parameters ONCE: they are reused across calls, so
        # no per-forward HBM pass over W.
        self._w = jnp.pad(
            w.astype(jnp.bfloat16),
            ((0, self.k_pad - self.k_in), (0, self.n_pad - self.n_out)),
        )
        pad_n = ((0, 0), (0, self.n_pad - self.n_out))
        b32 = b.astype(jnp.float32).reshape(1, self.n_out)
        adv32 = adv.astype(jnp.float32).reshape(1, self.n_out)
        self._b_hooked = jnp.pad(b32 + adv32, pad_n)   # enabled:  b + adv
        self._b_plain = jnp.pad(b32, pad_n)            # disabled: b
        self.enabled = True

    def __call__(self, x, *, vmem_budget_override=None):
        assert x.shape[-1] == self.k_in
        b_eff = self._b_hooked if self.enabled else self._b_plain
        return _hook_linear_forward(
            x, self._w, b_eff, self.n_out,
            vmem_budget_override=vmem_budget_override,
        )


if __name__ == "__main__":
    key = jax.random.PRNGKey(0)
    kx, kw, kb, ka, kx2, kw2, kb2, ka2 = jax.random.split(key, 8)

    # --- Test 1: tiny transformer-ish shape; exercises the full-K 2-D path. --
    batch, seq, hidden = 2, 8, 32
    x = jax.random.normal(kx, (batch, seq, hidden), dtype=jnp.float32)
    w = jax.random.normal(kw, (hidden, hidden), dtype=jnp.float32) * 0.02
    b = jax.random.normal(kb, (hidden,), dtype=jnp.float32) * 0.01
    adv = jax.random.normal(ka, (hidden,), dtype=jnp.float32) * 0.1

    hook = CustomHookLinear(w, b, adv)

    # Reference with the same bf16-operand / f32-accumulate contraction.
    base = jnp.dot(
        x.reshape(-1, hidden).astype(jnp.bfloat16),
        w.astype(jnp.bfloat16),
        preferred_element_type=jnp.float32,
    )

    hook.enabled = True                                  # hook_fn(module(x))
    y_on = jax.block_until_ready(hook(x))
    assert y_on.shape == (batch, seq, hidden)
    assert jnp.allclose(y_on.reshape(-1, hidden), base + b + adv,
                        atol=1e-3, rtol=1e-3)

    hook.enabled = False                                 # module(x) only
    y_off = jax.block_until_ready(hook(x))
    assert jnp.allclose(y_off.reshape(-1, hidden), base + b,
                        atol=1e-3, rtol=1e-3)

    # --- Test 2: larger hidden + tiny VMEM-budget override to exercise the
    # split-K (3-D grid, f32-output-accumulator) path. ------------------------
    hidden2 = 256
    x2 = jax.random.normal(kx2, (batch, seq, hidden2), dtype=jnp.float32)
    w2 = jax.random.normal(kw2, (hidden2, hidden2), dtype=jnp.float32) * 0.02
    b2 = jax.random.normal(kb2, (hidden2,), dtype=jnp.float32) * 0.01
    adv2 = jax.random.normal(ka2, (hidden2,), dtype=jnp.float32) * 0.1

    hook2 = CustomHookLinear(w2, b2, adv2)
    hook2.enabled = True
    y2 = jax.block_until_ready(hook2(x2, vmem_budget_override=100 * 1024))
    base2 = jnp.dot(
        x2.reshape(-1, hidden2).astype(jnp.bfloat16),
        w2.astype(jnp.bfloat16),
        preferred_element_type=jnp.float32,
    )
    assert jnp.allclose(y2.reshape(-1, hidden2), base2 + b2 + adv2,
                        atol=1e-3, rtol=1e-3)

    print("KERNEL_OK")
</pallas_src>

<mosaic_0001>
module attributes {stable_mosaic.version = 11 : i64} {
  func.func @_fullk_kernel(%arg0: i32, %arg1: i32, %arg2: memref<16x128xf32, #tpu.memory_space<vmem>>, %arg3: memref<128x128xbf16, #tpu.memory_space<vmem>>, %arg4: memref<1x128xf32, #tpu.memory_space<vmem>>, %arg5: memref<16x128xf32, #tpu.memory_space<vmem>>) attributes {dimension_semantics = [#tpu.dimension_semantics<parallel>, #tpu.dimension_semantics<parallel>], iteration_bounds = array<i64: 1, 1>, scalar_prefetch = 0 : i64, scratch_operands = 0 : i64, tpu.core_type = #tpu.core_type<tc>, window_params = [{transform_indices = @transform_0, window_bounds = array<i64: 16, 128>}, {transform_indices = @transform_1, window_bounds = array<i64: 128, 128>}, {transform_indices = @transform_2, window_bounds = array<i64: 1, 128>}, {transform_indices = @transform_3, window_bounds = array<i64: 16, 128>}]} {
    %c0 = arith.constant 0 : index
    %c0_0 = arith.constant 0 : index
    %0 = vector.load %arg2[%c0, %c0_0] : memref<16x128xf32, #tpu.memory_space<vmem>>, vector<16x128xf32>
    %1 = arith.truncf %0 : vector<16x128xf32> to vector<16x128xbf16>
    %c0_1 = arith.constant 0 : index
    %c0_2 = arith.constant 0 : index
    %2 = vector.load %arg3[%c0_1, %c0_2] : memref<128x128xbf16, #tpu.memory_space<vmem>>, vector<128x128xbf16>
    %cst = arith.constant dense<0.000000e+00> : vector<16x128xf32>
    %3 = tpu.matmul %1, %2, %cst {dimension_numbers = #tpu.dot_dimension_numbers<[1], [0], [0], [1], [0, 0, 1, 1], [], []>} : vector<16x128xbf16>, vector<128x128xbf16>, vector<16x128xf32> -> vector<16x128xf32>
    %c0_3 = arith.constant 0 : index
    %c0_4 = arith.constant 0 : index
    %4 = vector.load %arg4[%c0_3, %c0_4] : memref<1x128xf32, #tpu.memory_space<vmem>>, vector<1x128xf32>
    %5 = vector.broadcast %4 : vector<1x128xf32> to vector<16x128xf32>
    %6 = arith.addf %3, %5 : vector<16x128xf32>
    %c0_5 = arith.constant 0 : index
    %c0_6 = arith.constant 0 : index
    %7 = vector.load %arg5[%c0_5, %c0_6] : memref<16x128xf32, #tpu.memory_space<vmem>>, vector<16x128xf32>
    tpu.vector_store %arg5[%c0_5, %c0_6], %6 {strides = array<i32>} : memref<16x128xf32, #tpu.memory_space<vmem>>, vector<16x128xf32>,
    return
  }
  func.func @transform_0(%arg0: i32, %arg1: i32) -> (i32, i32) {
    %c0_i32 = arith.constant 0 : i32
    %c0_i32_0 = arith.constant 0 : i32
    return %arg0, %c0_i32 : i32, i32
  }
  func.func @transform_1(%arg0: i32, %arg1: i32) -> (i32, i32) {
    %c0_i32 = arith.constant 0 : i32
    %c0_i32_0 = arith.constant 0 : i32
    return %c0_i32, %arg1 : i32, i32
  }
  func.func @transform_2(%arg0: i32, %arg1: i32) -> (i32, i32) {
    %c0_i32 = arith.constant 0 : i32
    %c0_i32_0 = arith.constant 0 : i32
    return %c0_i32, %arg1 : i32, i32
  }
  func.func @transform_3(%arg0: i32, %arg1: i32) -> (i32, i32) {
    %c0_i32 = arith.constant 0 : i32
    return %arg0, %arg1 : i32, i32
  }
}

</mosaic_0001>

<llo_original>
// kernel: tpu_custom_call.1
$region0: #{tpu_custom_call.1}
  #allocation0 [shape = 'u32[]', space=smem, size = 0x4, offset = 0x4, fixed_abs, tag = 'smem constant byte address 0x4 - core index']
  #allocation1 [shape = 'u32[144,128]{1,0:T(1,128)}', space=vmem, size = 0x12000, scoped, tag = 'internal scratch']
  %s0 = inlined_call_operand.hbm [shape: f32[16,128], index: 0, kind: input, shape index: {}]
  %s1 = inlined_call_operand.hbm [shape: bf16[128,128], index: 1, kind: input, shape index: {}]
  %s2 = inlined_call_operand.vmem [shape: f32[1,128], index: 2, kind: input, shape index: {}]
  %s3 = inlined_call_operand.hbm [shape: f32[16,128], index: 3, kind: output, shape index: {}]
  %s4 = sld [smem:[#allocation0]]
  $region30: #{tpu_custom_call.1} parent=0
    _
  %s6 = ssub.s32 1, %s4
  %s7 = scalar_select 0, %s6, %s4
  $region1: #{tpu_custom_call.1} parent=0
    #allocation2 [shape = 'u8[8192]{0}', space=vmem, size = 0x2000, scoped, tag = 'input window, operand 0, single buffered']
    #allocation3 [shape = 's32[1]{0}', space=sflag, size = 0x4, scoped, tag = 'scoped memory for tpu_custom_call.1']
    #allocation4 [shape = 's32[1]{0}', space=sflag, size = 0x4, scoped, tag = 'scoped memory for tpu_custom_call.1']
    #allocation5 [shape = 'u8[32768]{0}', space=vmem, size = 0x8000, scoped, tag = 'input window, operand 1, single buffered']
    #allocation6 [shape = 's32[1]{0}', space=sflag, size = 0x4, scoped, tag = 'scoped memory for tpu_custom_call.1']
    #allocation7 [shape = 'u8[8192]{0}', space=vmem, size = 0x2000, scoped, tag = 'output window, operand 0, single buffered']
    %8 = vsyncpa [#allocation3], 0
    %9 = vsyncpa [#allocation6], 0
    %10 = vsyncpa [#allocation4], 0
    // Predicated region
    $region2: #{tpu_custom_call.1} parent=1 // pred_check
      _
    $region3: #{tpu_custom_call.1} parent=1 // pred_check_branch
      %12 = sbr.rel (0) target = $region5
    $region4: #{tpu_custom_call.1} parent=1 // pred_region
      %s14 = ssub.s32 256, 256
      %15 = vsyncadd [#allocation3], %s14
      %s16 = sshll.u32 [#allocation2], 4
      %s17 = int_to_ptr.vmem [resolvable:$true] %s16
      %22 = dma.hbm_to_vmem [thread:$0]  %s0, 256, %s17, [#allocation3], 128, 128, 8
    $region5: #{tpu_custom_call.1} parent=1 // pred_fallthru
      _
    // Predicated region
    $region6: #{tpu_custom_call.1} parent=1 // pred_check
      _
    $region7: #{tpu_custom_call.1} parent=1 // pred_check_branch
      %24 = sbr.rel (0) target = $region9
    $region8: #{tpu_custom_call.1} parent=1 // pred_region
      %s26 = ssub.s32 1024, 1024
      %27 = vsyncadd [#allocation6], %s26
      %s28 = sshll.u32 [#allocation5], 4
      %s29 = int_to_ptr.vmem [resolvable:$true] %s28
      %34 = dma.hbm_to_vmem [thread:$0]  %s1, 1024, %s29, [#allocation6], 64, 64, 4
    $region9: #{tpu_custom_call.1} parent=1 // pred_fallthru
      _
    // Predicated region
    $region10: #{tpu_custom_call.1} parent=1 // pred_check
      _
    $region11: #{tpu_custom_call.1} parent=1 // pred_check_branch
      %36 = sbr.rel (0) target = $region13
    $region12: #{tpu_custom_call.1} parent=1 // pred_region
      _
    $region13: #{tpu_custom_call.1} parent=1 // pred_fallthru
      _
    // Predicated region
    $region14: #{tpu_custom_call.1} parent=1 // pred_check
      _
    $region15: #{tpu_custom_call.1} parent=1 // pred_check_branch
      %38 = sbr.rel (0) target = $region17
    $region16: #{tpu_custom_call.1} parent=1 // pred_region
      %39 = dma.done [#allocation3], 256
    $region17: #{tpu_custom_call.1} parent=1 // pred_fallthru
      _
    // Predicated region
    $region18: #{tpu_custom_call.1} parent=1 // pred_check
      _
    $region19: #{tpu_custom_call.1} parent=1 // pred_check_branch
      %41 = sbr.rel (0) target = $region21
    $region20: #{tpu_custom_call.1} parent=1 // pred_region
      %42 = dma.done [#allocation6], 1024
    $region21: #{tpu_custom_call.1} parent=1 // pred_fallthru
      _
    %v44 = vld [vmem:[#allocation2] sm:$0xff]
    %v45 = vld [vmem:[#allocation2 + $0x8] sm:$0xff]
    %v46 = vpack.c.bf16 %v45, %v44
    %v47 = vld [vmem:[#allocation5] sm:$0xf]
    %v48 = vld [vmem:[#allocation5 + $0x4] sm:$0xf]
    %v49 = vld [vmem:[#allocation5 + $0x8] sm:$0xf]
    %v50 = vld [vmem:[#allocation5 + $0xc] sm:$0xf]
    %v51 = vld [vmem:[#allocation5 + $0x10] sm:$0xf]
    %v52 = vld [vmem:[#allocation5 + $0x14] sm:$0xf]
    %v53 = vld [vmem:[#allocation5 + $0x18] sm:$0xf]
    %v54 = vld [vmem:[#allocation5 + $0x1c] sm:$0xf]
    %v55 = vld [vmem:[#allocation5 + $0x20] sm:$0xf]
    %v56 = vld [vmem:[#allocation5 + $0x24] sm:$0xf]
    %v57 = vld [vmem:[#allocation5 + $0x28] sm:$0xf]
    %v58 = vld [vmem:[#allocation5 + $0x2c] sm:$0xf]
    %v59 = vld [vmem:[#allocation5 + $0x30] sm:$0xf]
    %v60 = vld [vmem:[#allocation5 + $0x34] sm:$0xf]
    %v61 = vld [vmem:[#allocation5 + $0x38] sm:$0xf]
    %v62 = vld [vmem:[#allocation5 + $0x3c] sm:$0xf]
    %v63 = vld [vmem:[%s2] sm:$0x1]
    %v65 = vlaneseq
    %v66 = vshrl.u32 %v65, 7
    %v67 = vsub.s32 0, %v66
    %v68 = vrot.slane %v63, %v67
    %v86 = vunpack.c.l.b16 %v47
    %v87 = vunpack.c.l.b16 %v48
    %v88 = vunpack.c.l.b16 %v49
    %v89 = vunpack.c.l.b16 %v50
    %v90 = vunpack.c.l.b16 %v51
    %v91 = vunpack.c.l.b16 %v52
    %v92 = vunpack.c.l.b16 %v53
    %v93 = vunpack.c.l.b16 %v54
    %v94 = vunpack.c.l.b16 %v55
    %v95 = vunpack.c.l.b16 %v56
    %v96 = vunpack.c.l.b16 %v57
    %v97 = vunpack.c.l.b16 %v58
    %v98 = vunpack.c.l.b16 %v59
    %v99 = vunpack.c.l.b16 %v60
    %v100 = vunpack.c.l.b16 %v61
    %v101 = vunpack.c.l.b16 %v62
    %v102 = vpack.c.b16 %v87, %v86
    %v103 = vpack.c.b16 %v89, %v88
    %v104 = vpack.c.b16 %v91, %v90
    %v105 = vpack.c.b16 %v93, %v92
    %v106 = vpack.c.b16 %v95, %v94
    %v107 = vpack.c.b16 %v97, %v96
    %v108 = vpack.c.b16 %v99, %v98
    %v109 = vpack.c.b16 %v101, %v100
    %118 = vmatprep.subr.bf16.mxu0 0
    %119 = vmatpush1.bf16.msra.mxu0 %v102
    %120 = vmatprep.subr.bf16.mxu0 0
    %121 = vmatpush1.bf16.msra.mxu0 %v103
    %122 = vmatprep.subr.bf16.mxu0 0
    %123 = vmatpush1.bf16.msra.mxu0 %v104
    %124 = vmatprep.subr.bf16.mxu0 0
    %125 = vmatpush1.bf16.msra.mxu0 %v105
    %126 = vmatprep.subr.bf16.mxu0 0
    %127 = vmatpush1.bf16.msra.mxu0 %v106
    %128 = vmatprep.subr.bf16.mxu0 0
    %129 = vmatpush1.bf16.msra.mxu0 %v107
    %130 = vmatprep.subr.bf16.mxu0 0
    %131 = vmatpush1.bf16.msra.mxu0 %v108
    %132 = vmatprep.subr.bf16.mxu0 0
    %133 = vmatpush1.bf16.msra.mxu0 %v109
    %134 = vmatprep.subr.bf16.mxu0 0
    %135 = vmatpush1.bf16.msra.mxu0 0
    %136 = vmatprep.subr.bf16.mxu0 0
    %137 = vmatpush1.bf16.msra.mxu0 0
    %138 = vmatprep.subr.bf16.mxu0 0
    %139 = vmatpush1.bf16.msra.mxu0 0
    %140 = vmatprep.subr.bf16.mxu0 0
    %141 = vmatpush1.bf16.msra.mxu0 0
    %142 = vmatprep.subr.bf16.mxu0 0
    %143 = vmatpush1.bf16.msra.mxu0 0
    %144 = vmatprep.subr.bf16.mxu0 0
    %145 = vmatpush1.bf16.msra.mxu0 0
    %146 = vmatprep.subr.bf16.mxu0 0
    %147 = vmatpush1.bf16.msra.mxu0 0
    %148 = vmatprep.subr.bf16.mxu0 0
    %149 = vmatpush1.bf16.msra.mxu0 0
    %150 = vmatprep.mubr.bf16.mxu0 0
    %151 = vmatmul.mubr.bf16.gmra.mrb[0].mxu0 %v46
    %v152 = vpop.f32.mrb[0].mxu0
    %v153 = vadd.f32 %v68, %v152
    %v154 = vpop.f32.mrb[0].mxu0
    %v155 = vpop.f32.mrb[0].mxu0
    %v156 = vadd.f32 %v68, %v155
    %v157 = vpop.f32.mrb[0].mxu0
    %158 = vdwg.mxu0
    %159 = vst [vmem:[#allocation7] sm:$0xff] %v153
    %160 = vst [vmem:[#allocation7 + $0x8] sm:$0xff] %v156
    // Predicated region
    $region22: #{tpu_custom_call.1} parent=1 // pred_check
      _
    $region23: #{tpu_custom_call.1} parent=1 // pred_check_branch
      %162 = sbr.rel (0) target = $region25
    $region24: #{tpu_custom_call.1} parent=1 // pred_region
      %s164 = ssub.s32 256, 256
      %165 = vsyncadd [#allocation4], %s164
      %s166 = sshll.u32 [#allocation7], 4
      %s167 = int_to_ptr.vmem [resolvable:$true] %s166
      %172 = dma.vmem_to_hbm [thread:$0]  %s167, 256, %s3, [#allocation4], 128, 128, 8
    $region25: #{tpu_custom_call.1} parent=1 // pred_fallthru
      _
    // Predicated region
    $region26: #{tpu_custom_call.1} parent=1 // pred_check
      _
    $region27: #{tpu_custom_call.1} parent=1 // pred_check_branch
      %174 = sbr.rel (0) target = $region29
    $region28: #{tpu_custom_call.1} parent=1 // pred_region
      %175 = dma.done [#allocation4], 256
    $region29: #{tpu_custom_call.1} parent=1 // pred_fallthru
      _
    %176 = vsyncpa [#allocation3], 1
    %177 = vsyncpa [#allocation6], 1
    %178 = vsyncpa [#allocation4], 1

</llo_original>
